<compile_context>
chip_gen: v5e
topology: v5e:2x2
jax: 0.10.0
libtpu: 0.0.40
codegen_flags: <defaults>
</compile_context>

<pallas_src>
import math

import jax
import jax.numpy as jnp
from jax.experimental import pallas as pl
from jax.experimental.pallas import tpu as pltpu

_LANE = 128
_SUBLANE = 8


def _round_up(v, m):
    return ((v + m - 1) // m) * m


# ---------------------------------------------------------------------------
# Activations (identical formulas used in-kernel and in the pure-JAX reference)
# ---------------------------------------------------------------------------
def _softplus(x, beta=1.0, threshold=20.0):
    """PyTorch-style Softplus: linear above beta*x > threshold."""
    z = beta * x
    safe = jnp.minimum(z, threshold)
    return jnp.where(z > threshold, x, jnp.log(1.0 + jnp.exp(safe)) / beta)


def _hidden_activation(sphere_init):
    if sphere_init:
        return lambda h: _softplus(h, beta=100.0)   # nn.Softplus(beta=100)
    return lambda h: jnp.maximum(h, 0.0)            # nn.ReLU


def _output_activation(name):
    if name is None or str(name).lower() in ("none", "identity"):
        return lambda h: h
    name = str(name).lower()
    if name == "relu":
        return lambda h: jnp.maximum(h, 0.0)
    if name == "sigmoid":
        return lambda h: 1.0 / (1.0 + jnp.exp(-h))
    if name == "tanh":
        return jnp.tanh
    if name in ("exp", "trunc_exp"):
        return jnp.exp
    if name == "softplus":
        return lambda h: _softplus(h, beta=1.0)
    raise ValueError(f"unsupported output_activation: {name}")


# ---------------------------------------------------------------------------
# Init: mirrors VanillaMLP.make_linear (kaiming-uniform or sphere init).
# Weights are stored as (in, out) = torch weight transposed.
# Padded copies (lane-dense) are prepared here, outside the forward hot path.
# ---------------------------------------------------------------------------
def vanilla_mlp_init(key, dim_in, dim_out, config):
    n_neurons = config["n_neurons"]
    n_hidden_layers = config["n_hidden_layers"]
    sphere_init = config.get("sphere_init", False)
    sphere_init_radius = config.get("sphere_init_radius", 0.5)
    # nn.utils.weight_norm is a reparameterization; at init g = ||v|| so the
    # effective weight equals the initialized weight and the forward pass is
    # unchanged -> it is folded here (no separate g/v needed for forward).
    _ = config.get("weight_norm", False)

    dims = [dim_in] + [n_neurons] * n_hidden_layers + [dim_out]
    n_lin = len(dims) - 1  # = n_hidden_layers + 1 Linear layers

    Ws, Bs, Ws_pad, Bs_pad = [], [], [], []
    for l in range(n_lin):
        d_i, d_o = dims[l], dims[l + 1]
        key, k_w = jax.random.split(key)
        is_first, is_last = (l == 0), (l == n_lin - 1)

        if sphere_init:
            if is_last:
                b = jnp.full((d_o,), -sphere_init_radius, jnp.float32)
                w = (math.sqrt(math.pi) / math.sqrt(d_i)
                     + 1e-4 * jax.random.normal(k_w, (d_i, d_o), jnp.float32))
            elif is_first:
                b = jnp.zeros((d_o,), jnp.float32)
                std = math.sqrt(2.0) / math.sqrt(d_o)
                k3 = min(3, d_i)
                w = jnp.zeros((d_i, d_o), jnp.float32)
                w = w.at[:k3, :].set(
                    std * jax.random.normal(k_w, (k3, d_o), jnp.float32))
            else:
                b = jnp.zeros((d_o,), jnp.float32)
                std = math.sqrt(2.0) / math.sqrt(d_o)
                w = std * jax.random.normal(k_w, (d_i, d_o), jnp.float32)
        else:
            b = jnp.zeros((d_o,), jnp.float32)
            # kaiming_uniform_(nonlinearity='relu'): bound = sqrt(6 / fan_in)
            bound = math.sqrt(6.0 / d_i)
            w = jax.random.uniform(k_w, (d_i, d_o), jnp.float32, -bound, bound)

        Ws.append(w)
        Bs.append(b)

        d_i_p, d_o_p = _round_up(d_i, _LANE), _round_up(d_o, _LANE)
        Ws_pad.append(jnp.zeros((d_i_p, d_o_p), jnp.float32).at[:d_i, :d_o].set(w))
        Bs_pad.append(jnp.zeros((1, d_o_p), jnp.float32).at[0, :d_o].set(b))

    return {
        "dim_in": dim_in,
        "dim_out": dim_out,
        "n_linear": n_lin,
        "sphere_init": sphere_init,
        "output_activation": config["output_activation"],
        "Ws": Ws, "Bs": Bs,               # unpadded (for reference checks)
        "Ws_pad": Ws_pad, "Bs_pad": Bs_pad,  # lane-dense padded (for kernel)
    }


# ---------------------------------------------------------------------------
# Kernel: fused MLP over one (tile_n, din_p) row block.
# ---------------------------------------------------------------------------
def _make_mlp_kernel(n_lin, hidden_act, out_act):
    def kernel(*refs):
        # refs = [x, w0, b0, w1, b1, ..., w_{L-1}, b_{L-1}, o]
        x_ref = refs[0]
        o_ref = refs[1 + 2 * n_lin]
        h = x_ref[...]  # (tile_n, din_p) f32
        for l in range(n_lin):
            w = refs[1 + 2 * l][...]          # (d_i_p, d_o_p), resident in VMEM
            b = refs[2 + 2 * l][...]          # (1, d_o_p)
            h = jnp.dot(h, w, preferred_element_type=jnp.float32) + b
            if l < n_lin - 1:
                h = hidden_act(h)
        o_ref[...] = out_act(h)               # lane-dense full-block store
    return kernel


def vanilla_mlp_forward(params, x, *, tile_n=256):
    """x: (..., dim_in) -> (..., dim_out), f32 (matches autocast(False))."""
    dim_in = params["dim_in"]
    dim_out = params["dim_out"]
    n_lin = params["n_linear"]
    assert x.shape[-1] == dim_in
    assert tile_n % _SUBLANE == 0

    lead = x.shape[:-1]
    x2 = x.reshape(-1, dim_in).astype(jnp.float32)
    n_rows = x2.shape[0]

    din_p = params["Ws_pad"][0].shape[0]
    dout_p = params["Bs_pad"][-1].shape[1]

    # Pad rows up to a multiple of the tile (never collapse to one giant block).
    n_pad = _round_up(max(n_rows, 1), tile_n)
    x_p = jnp.zeros((n_pad, din_p), jnp.float32).at[:n_rows, :dim_in].set(x2)

    kernel = _make_mlp_kernel(
        n_lin,
        _hidden_activation(params["sphere_init"]),
        _output_activation(params["output_activation"]),
    )

    in_specs = [pl.BlockSpec((tile_n, din_p), lambda i: (i, 0))]
    ins = [x_p]
    for w_p, b_p in zip(params["Ws_pad"], params["Bs_pad"]):
        # Constant block index -> loaded once, stays resident across the grid.
        in_specs.append(pl.BlockSpec(w_p.shape, lambda i: (0, 0)))
        in_specs.append(pl.BlockSpec(b_p.shape, lambda i: (0, 0)))
        ins += [w_p, b_p]

    out = pl.pallas_call(
        kernel,
        out_shape=jax.ShapeDtypeStruct((n_pad, dout_p), jnp.float32),
        grid_spec=pltpu.PrefetchScalarGridSpec(
            num_scalar_prefetch=0,
            grid=(n_pad // tile_n,),
            in_specs=in_specs,
            out_specs=pl.BlockSpec((tile_n, dout_p), lambda i: (i, 0)),
        ),
        compiler_params=pltpu.CompilerParams(
            dimension_semantics=("parallel",)),
    )(*ins)

    return out[:n_rows, :dim_out].reshape(*lead, dim_out)


# ---------------------------------------------------------------------------
# Pure-JAX reference with identical semantics to the PyTorch forward.
# ---------------------------------------------------------------------------
def _reference_forward(params, x):
    hidden_act = _hidden_activation(params["sphere_init"])
    out_act = _output_activation(params["output_activation"])
    h = x.astype(jnp.float32)
    n_lin = params["n_linear"]
    for l in range(n_lin):
        h = jnp.dot(h, params["Ws"][l],
                    precision=jax.lax.Precision.HIGHEST) + params["Bs"][l]
        if l < n_lin - 1:
            h = hidden_act(h)
    return out_act(h)


if __name__ == "__main__":
    key = jax.random.PRNGKey(0)
    k_params, k_params2, k_x = jax.random.split(key, 3)

    dim_in, dim_out = 4, 4

    # --- default path: kaiming init, ReLU hidden, identity output ------------
    config = {
        "n_neurons": 32,
        "n_hidden_layers": 2,
        "sphere_init": False,
        "weight_norm": False,
        "output_activation": "none",
    }
    params = vanilla_mlp_init(k_params, dim_in, dim_out, config)

    # Small but non-trivial: 2 * 256 = 512 rows -> grid of 2 parallel tiles.
    x = jax.random.normal(k_x, (2, 256, dim_in), dtype=jnp.float32)

    out = vanilla_mlp_forward(params, x, tile_n=256)
    out = jax.block_until_ready(out)
    ref = _reference_forward(params, x)
    assert out.shape == (2, 256, dim_out), out.shape
    assert jnp.allclose(out, ref, atol=1e-3, rtol=1e-3), \
        float(jnp.max(jnp.abs(out - ref)))

    # --- sphere_init path: Softplus(beta=100) hidden, sigmoid output ---------
    config_s = {
        "n_neurons": 32,
        "n_hidden_layers": 2,
        "sphere_init": True,
        "sphere_init_radius": 0.5,
        "weight_norm": False,
        "output_activation": "sigmoid",
    }
    params_s = vanilla_mlp_init(k_params2, dim_in, dim_out, config_s)
    out_s = jax.block_until_ready(vanilla_mlp_forward(params_s, x, tile_n=256))
    ref_s = _reference_forward(params_s, x)
    assert jnp.allclose(out_s, ref_s, atol=1e-3, rtol=1e-3), \
        float(jnp.max(jnp.abs(out_s - ref_s)))

    print("KERNEL_OK")
</pallas_src>

<mosaic_0001>
module attributes {stable_mosaic.version = 11 : i64} {
  func.func @kernel(%arg0: i32, %arg1: memref<256x128xf32, #tpu.memory_space<vmem>>, %arg2: memref<128x128xf32, #tpu.memory_space<vmem>>, %arg3: memref<1x128xf32, #tpu.memory_space<vmem>>, %arg4: memref<128x128xf32, #tpu.memory_space<vmem>>, %arg5: memref<1x128xf32, #tpu.memory_space<vmem>>, %arg6: memref<128x128xf32, #tpu.memory_space<vmem>>, %arg7: memref<1x128xf32, #tpu.memory_space<vmem>>, %arg8: memref<256x128xf32, #tpu.memory_space<vmem>>) attributes {dimension_semantics = [#tpu.dimension_semantics<parallel>], iteration_bounds = array<i64: 2>, scalar_prefetch = 0 : i64, scratch_operands = 0 : i64, tpu.core_type = #tpu.core_type<tc>, window_params = [{transform_indices = @transform_0, window_bounds = array<i64: 256, 128>}, {pipeline_mode = #tpu.pipeline_mode<synchronous>, transform_indices = @transform_1, window_bounds = array<i64: 128, 128>}, {pipeline_mode = #tpu.pipeline_mode<synchronous>, transform_indices = @transform_2, window_bounds = array<i64: 1, 128>}, {pipeline_mode = #tpu.pipeline_mode<synchronous>, transform_indices = @transform_3, window_bounds = array<i64: 128, 128>}, {pipeline_mode = #tpu.pipeline_mode<synchronous>, transform_indices = @transform_4, window_bounds = array<i64: 1, 128>}, {pipeline_mode = #tpu.pipeline_mode<synchronous>, transform_indices = @transform_5, window_bounds = array<i64: 128, 128>}, {pipeline_mode = #tpu.pipeline_mode<synchronous>, transform_indices = @transform_6, window_bounds = array<i64: 1, 128>}, {transform_indices = @transform_7, window_bounds = array<i64: 256, 128>}]} {
    %c0 = arith.constant 0 : index
    %c0_0 = arith.constant 0 : index
    %0 = vector.load %arg1[%c0, %c0_0] : memref<256x128xf32, #tpu.memory_space<vmem>>, vector<256x128xf32>
    %c0_1 = arith.constant 0 : index
    %c0_2 = arith.constant 0 : index
    %1 = vector.load %arg2[%c0_1, %c0_2] : memref<128x128xf32, #tpu.memory_space<vmem>>, vector<128x128xf32>
    %c0_3 = arith.constant 0 : index
    %c0_4 = arith.constant 0 : index
    %2 = vector.load %arg3[%c0_3, %c0_4] : memref<1x128xf32, #tpu.memory_space<vmem>>, vector<1x128xf32>
    %cst = arith.constant dense<0.000000e+00> : vector<256x128xf32>
    %3 = tpu.matmul %0, %1, %cst {dimension_numbers = #tpu.dot_dimension_numbers<[1], [0], [0], [1], [0, 0, 1, 1], [], []>} : vector<256x128xf32>, vector<128x128xf32>, vector<256x128xf32> -> vector<256x128xf32>
    %4 = vector.broadcast %2 : vector<1x128xf32> to vector<256x128xf32>
    %5 = arith.addf %3, %4 : vector<256x128xf32>
    %cst_5 = arith.constant 0.000000e+00 : f32
    %6 = vector.broadcast %cst_5 : f32 to vector<256x128xf32>
    %7 = arith.maximumf %5, %6 : vector<256x128xf32>
    %c0_6 = arith.constant 0 : index
    %c0_7 = arith.constant 0 : index
    %8 = vector.load %arg4[%c0_6, %c0_7] : memref<128x128xf32, #tpu.memory_space<vmem>>, vector<128x128xf32>
    %c0_8 = arith.constant 0 : index
    %c0_9 = arith.constant 0 : index
    %9 = vector.load %arg5[%c0_8, %c0_9] : memref<1x128xf32, #tpu.memory_space<vmem>>, vector<1x128xf32>
    %cst_10 = arith.constant dense<0.000000e+00> : vector<256x128xf32>
    %10 = tpu.matmul %7, %8, %cst_10 {dimension_numbers = #tpu.dot_dimension_numbers<[1], [0], [0], [1], [0, 0, 1, 1], [], []>} : vector<256x128xf32>, vector<128x128xf32>, vector<256x128xf32> -> vector<256x128xf32>
    %11 = vector.broadcast %9 : vector<1x128xf32> to vector<256x128xf32>
    %12 = arith.addf %10, %11 : vector<256x128xf32>
    %cst_11 = arith.constant 0.000000e+00 : f32
    %13 = vector.broadcast %cst_11 : f32 to vector<256x128xf32>
    %14 = arith.maximumf %12, %13 : vector<256x128xf32>
    %c0_12 = arith.constant 0 : index
    %c0_13 = arith.constant 0 : index
    %15 = vector.load %arg6[%c0_12, %c0_13] : memref<128x128xf32, #tpu.memory_space<vmem>>, vector<128x128xf32>
    %c0_14 = arith.constant 0 : index
    %c0_15 = arith.constant 0 : index
    %16 = vector.load %arg7[%c0_14, %c0_15] : memref<1x128xf32, #tpu.memory_space<vmem>>, vector<1x128xf32>
    %cst_16 = arith.constant dense<0.000000e+00> : vector<256x128xf32>
    %17 = tpu.matmul %14, %15, %cst_16 {dimension_numbers = #tpu.dot_dimension_numbers<[1], [0], [0], [1], [0, 0, 1, 1], [], []>} : vector<256x128xf32>, vector<128x128xf32>, vector<256x128xf32> -> vector<256x128xf32>
    %18 = vector.broadcast %16 : vector<1x128xf32> to vector<256x128xf32>
    %19 = arith.addf %17, %18 : vector<256x128xf32>
    %c0_17 = arith.constant 0 : index
    %c0_18 = arith.constant 0 : index
    %20 = vector.load %arg8[%c0_17, %c0_18] : memref<256x128xf32, #tpu.memory_space<vmem>>, vector<256x128xf32>
    tpu.vector_store %arg8[%c0_17, %c0_18], %19 {strides = array<i32>} : memref<256x128xf32, #tpu.memory_space<vmem>>, vector<256x128xf32>,
    return
  }
  func.func @transform_0(%arg0: i32) -> (i32, i32) {
    %c0_i32 = arith.constant 0 : i32
    %c0_i32_0 = arith.constant 0 : i32
    return %arg0, %c0_i32 : i32, i32
  }
  func.func @transform_1(%arg0: i32) -> (i32, i32) {
    %c0_i32 = arith.constant 0 : i32
    %c0_i32_0 = arith.constant 0 : i32
    %c0_i32_1 = arith.constant 0 : i32
    return %c0_i32, %c0_i32_0 : i32, i32
  }
  func.func @transform_2(%arg0: i32) -> (i32, i32) {
    %c0_i32 = arith.constant 0 : i32
    %c0_i32_0 = arith.constant 0 : i32
    %c0_i32_1 = arith.constant 0 : i32
    return %c0_i32, %c0_i32_0 : i32, i32
  }
  func.func @transform_3(%arg0: i32) -> (i32, i32) {
    %c0_i32 = arith.constant 0 : i32
    %c0_i32_0 = arith.constant 0 : i32
    %c0_i32_1 = arith.constant 0 : i32
    return %c0_i32, %c0_i32_0 : i32, i32
  }
  func.func @transform_4(%arg0: i32) -> (i32, i32) {
    %c0_i32 = arith.constant 0 : i32
    %c0_i32_0 = arith.constant 0 : i32
    %c0_i32_1 = arith.constant 0 : i32
    return %c0_i32, %c0_i32_0 : i32, i32
  }
  func.func @transform_5(%arg0: i32) -> (i32, i32) {
    %c0_i32 = arith.constant 0 : i32
    %c0_i32_0 = arith.constant 0 : i32
    %c0_i32_1 = arith.constant 0 : i32
    return %c0_i32, %c0_i32_0 : i32, i32
  }
  func.func @transform_6(%arg0: i32) -> (i32, i32) {
    %c0_i32 = arith.constant 0 : i32
    %c0_i32_0 = arith.constant 0 : i32
    %c0_i32_1 = arith.constant 0 : i32
    return %c0_i32, %c0_i32_0 : i32, i32
  }
  func.func @transform_7(%arg0: i32) -> (i32, i32) {
    %c0_i32 = arith.constant 0 : i32
    %c0_i32_0 = arith.constant 0 : i32
    return %arg0, %c0_i32 : i32, i32
  }
}

</mosaic_0001>

<llo_original>
// kernel: tpu_custom_call.1
$region0: #{tpu_custom_call.1}
  #allocation0 [shape = 'u32[]', space=smem, size = 0x4, offset = 0x4, fixed_abs, tag = 'smem constant byte address 0x4 - core index']
  #allocation1 [shape = 'u32[72,128]{1,0:T(1,128)}', space=vmem, size = 0x9000, scoped, tag = 'internal scratch']
  %s0 = inlined_call_operand.hbm [shape: f32[512,128], index: 0, kind: input, shape index: {}]
  %s1 = inlined_call_operand.hbm [shape: f32[128,128], index: 1, kind: input, shape index: {}]
  %s2 = inlined_call_operand.vmem [shape: f32[1,128], index: 2, kind: input, shape index: {}]
  %s3 = inlined_call_operand.hbm [shape: f32[128,128], index: 3, kind: input, shape index: {}]
  %s4 = inlined_call_operand.vmem [shape: f32[1,128], index: 4, kind: input, shape index: {}]
  %s5 = inlined_call_operand.hbm [shape: f32[128,128], index: 5, kind: input, shape index: {}]
  %s6 = inlined_call_operand.vmem [shape: f32[1,128], index: 6, kind: input, shape index: {}]
  %s7 = inlined_call_operand.hbm [shape: f32[512,128], index: 7, kind: output, shape index: {}]
  %s8 = sld [smem:[#allocation0]]
  $region77: #{tpu_custom_call.1} parent=0
    _
  %s10 = ssub.s32 1, %s8
  %s11 = scalar_select 0, %s10, %s8
  $region1: #{tpu_custom_call.1} parent=0
    #allocation2 [shape = 'u8[262144]{0}', space=vmem, size = 0x40000, scoped, tag = 'input window, operand 0']
    #allocation3 [shape = 's32[2]{0}', space=sflag, size = 0x8, scoped, tag = 'scoped memory for tpu_custom_call.1']
    #allocation4 [shape = 's32[2]{0}', space=sflag, size = 0x8, scoped, tag = 'scoped memory for tpu_custom_call.1']
    #allocation5 [shape = 'u8[65536]{0}', space=vmem, size = 0x10000, scoped, tag = 'input window, operand 1, single buffered']
    #allocation6 [shape = 's32[1]{0}', space=sflag, size = 0x4, scoped, tag = 'scoped memory for tpu_custom_call.1']
    #allocation7 [shape = 'u8[65536]{0}', space=vmem, size = 0x10000, scoped, tag = 'input window, operand 3, single buffered']
    #allocation8 [shape = 'u8[65536]{0}', space=vmem, size = 0x10000, scoped, tag = 'input window, operand 5, single buffered']
    #allocation9 [shape = 's32[1]{0}', space=sflag, size = 0x4, scoped, tag = 'scoped memory for tpu_custom_call.1']
    #allocation10 [shape = 'u8[262144]{0}', space=vmem, size = 0x40000, scoped, tag = 'output window, operand 0']
    %12 = vsyncpa [#allocation3], 0
    %s13 = scalar_lea.sflag [#allocation3], 1
    %14 = vsyncpa %s13, 0
    %15 = vsyncpa [#allocation6], 0
    %16 = vsyncpa [#allocation9], 0
    %17 = vsyncpa [#allocation4], 0
    %s18 = scalar_lea.sflag [#allocation4], 1
    %19 = vsyncpa %s18, 0
    loop: start=0, step=1, limit=4
    $region2: #{tpu_custom_call.1} parent=1 // loop_pre_header
      _
    $region3: #{tpu_custom_call.1} parent=1 // loop_header
      %s21 = sphi 0, %s25
      %p22 = scmp.ge.s32.totalorder %s21, 4
      %s31 = sphi 0, %s33
      %s34 = sphi 0, %s31
      %s35 = sphi 0, %s34
      %s51 = sphi 0, %s35
      %s55 = sphi 0, %s55
      %s57 = sphi 0, %s55
      %s58 = sphi 0, %s57
      %s72 = sphi 0, %s58
      %s76 = sphi 0, %s76
      %s78 = sphi 0, %s76
      %s79 = sphi 0, %s78
      %s93 = sphi 0, %s79
      %s97 = sphi 0, %s97
      %s99 = sphi 0, %s97
      %s100 = sphi 0, %s99
      %s114 = sphi 0, %s100
      %s118 = sphi 0, %s118
      %s120 = sphi 0, %s118
      %s121 = sphi 0, %s120
      %s135 = sphi 0, %s121
      %s139 = sphi 0, %s139
      %s141 = sphi 0, %s139
      %s142 = sphi 0, %s141
      %s156 = sphi 0, %s142
      %s160 = sphi 0, %s160
      %s162 = sphi 0, %s160
      %s163 = sphi 0, %s162
      %s177 = sphi 0, %s163
      %s183 = sphi 0, %s185
      %s186 = sphi 0, %s183
      %s187 = sphi 0, %s186
      %s203 = sphi 0, %s187
    $region4: #{tpu_custom_call.1} parent=1 // loop_header_branch
      %24 = sbr.rel (%p22) target = $region8
    $region5: #{tpu_custom_call.1} parent=1 // loop_body
      %s26 = ssub.s32 %s21, 1
      %s27 = ssub.s32 %s21, 2
      %s28 = sadd.s32 %s21, 1
      %s29 = ssub.s32 %s21, %s28
      %p30 = scmp.eq.s32.totalorder %s29, 0
      %s32 = sadd.s32 %s31, 1
      %s33 = scalar_select %p30, %s31, %s32
      %p36 = pneg %p30
      %p37 = scmp.eq.s32.totalorder %s21, 1
      %p38 = por %p36, %p37
      %p39 = scmp.ne.s32.totalorder %s31, %s34
      %p40 = scmp.eq.s32.totalorder %s21, 0
      %p41 = por %p39, %p40
      %p42 = scmp.ne.s32.totalorder %s31, %s34
      %p43 = scmp.eq.s32.totalorder %s26, 1
      %p44 = por %p42, %p43
      %p45 = scmp.ne.s32.totalorder %s34, %s35
      %p46 = scmp.eq.s32.totalorder %s26, 0
      %p47 = por %p45, %p46
      %p48 = scmp.ne.s32.totalorder %s34, %s35
      %p49 = scmp.eq.s32.totalorder %s27, 1
      %p50 = por %p48, %p49
      %p52 = scmp.ne.s32.totalorder %s35, %s51
      %p53 = scmp.eq.s32.totalorder %s27, 0
      %p54 = por %p52, %p53
      %s56 = sadd.s32 %s55, 1
      %p59 = scmp.eq.s32.totalorder %s21, 1
      %p60 = scmp.ne.s32.totalorder %s55, %s57
      %p61 = scmp.eq.s32.totalorder %s21, 0
      %p62 = por %p60, %p61
      %p63 = scmp.ne.s32.totalorder %s55, %s57
      %p64 = scmp.eq.s32.totalorder %s26, 1
      %p65 = por %p63, %p64
      %p66 = scmp.ne.s32.totalorder %s57, %s58
      %p67 = scmp.eq.s32.totalorder %s26, 0
      %p68 = por %p66, %p67
      %p69 = scmp.ne.s32.totalorder %s57, %s58
      %p70 = scmp.eq.s32.totalorder %s27, 1
      %p71 = por %p69, %p70
      %p73 = scmp.ne.s32.totalorder %s58, %s72
      %p74 = scmp.eq.s32.totalorder %s27, 0
      %p75 = por %p73, %p74
      %s77 = sadd.s32 %s76, 1
      %p80 = scmp.eq.s32.totalorder %s21, 1
      %p81 = scmp.ne.s32.totalorder %s76, %s78
      %p82 = scmp.eq.s32.totalorder %s21, 0
      %p83 = por %p81, %p82
      %p84 = scmp.ne.s32.totalorder %s76, %s78
      %p85 = scmp.eq.s32.totalorder %s26, 1
      %p86 = por %p84, %p85
      %p87 = scmp.ne.s32.totalorder %s78, %s79
      %p88 = scmp.eq.s32.totalorder %s26, 0
      %p89 = por %p87, %p88
      %p90 = scmp.ne.s32.totalorder %s78, %s79
      %p91 = scmp.eq.s32.totalorder %s27, 1
      %p92 = por %p90, %p91
      %p94 = scmp.ne.s32.totalorder %s79, %s93
      %p95 = scmp.eq.s32.totalorder %s27, 0
      %p96 = por %p94, %p95
      %s98 = sadd.s32 %s97, 1
      %p101 = scmp.eq.s32.totalorder %s21, 1
      %p102 = scmp.ne.s32.totalorder %s97, %s99
      %p103 = scmp.eq.s32.totalorder %s21, 0
      %p104 = por %p102, %p103
      %p105 = scmp.ne.s32.totalorder %s97, %s99
      %p106 = scmp.eq.s32.totalorder %s26, 1
      %p107 = por %p105, %p106
      %p108 = scmp.ne.s32.totalorder %s99, %s100
      %p109 = scmp.eq.s32.totalorder %s26, 0
      %p110 = por %p108, %p109
      %p111 = scmp.ne.s32.totalorder %s99, %s100
      %p112 = scmp.eq.s32.totalorder %s27, 1
      %p113 = por %p111, %p112
      %p115 = scmp.ne.s32.totalorder %s100, %s114
      %p116 = scmp.eq.s32.totalorder %s27, 0
      %p117 = por %p115, %p116
      %s119 = sadd.s32 %s118, 1
      %p122 = scmp.eq.s32.totalorder %s21, 1
      %p123 = scmp.ne.s32.totalorder %s118, %s120
      %p124 = scmp.eq.s32.totalorder %s21, 0
      %p125 = por %p123, %p124
      %p126 = scmp.ne.s32.totalorder %s118, %s120
      %p127 = scmp.eq.s32.totalorder %s26, 1
      %p128 = por %p126, %p127
      %p129 = scmp.ne.s32.totalorder %s120, %s121
      %p130 = scmp.eq.s32.totalorder %s26, 0
      %p131 = por %p129, %p130
      %p132 = scmp.ne.s32.totalorder %s120, %s121
      %p133 = scmp.eq.s32.totalorder %s27, 1
      %p134 = por %p132, %p133
      %p136 = scmp.ne.s32.totalorder %s121, %s135
      %p137 = scmp.eq.s32.totalorder %s27, 0
      %p138 = por %p136, %p137
      %s140 = sadd.s32 %s139, 1
      %p143 = scmp.eq.s32.totalorder %s21, 1
      %p144 = scmp.ne.s32.totalorder %s139, %s141
      %p145 = scmp.eq.s32.totalorder %s21, 0
      %p146 = por %p144, %p145
      %p147 = scmp.ne.s32.totalorder %s139, %s141
      %p148 = scmp.eq.s32.totalorder %s26, 1
      %p149 = por %p147, %p148
      %p150 = scmp.ne.s32.totalorder %s141, %s142
      %p151 = scmp.eq.s32.totalorder %s26, 0
      %p152 = por %p150, %p151
      %p153 = scmp.ne.s32.totalorder %s141, %s142
      %p154 = scmp.eq.s32.totalorder %s27, 1
      %p155 = por %p153, %p154
      %p157 = scmp.ne.s32.totalorder %s142, %s156
      %p158 = scmp.eq.s32.totalorder %s27, 0
      %p159 = por %p157, %p158
      %s161 = sadd.s32 %s160, 1
      %p164 = scmp.eq.s32.totalorder %s21, 1
      %p165 = scmp.ne.s32.totalorder %s160, %s162
      %p166 = scmp.eq.s32.totalorder %s21, 0
      %p167 = por %p165, %p166
      %p168 = scmp.ne.s32.totalorder %s160, %s162
      %p169 = scmp.eq.s32.totalorder %s26, 1
      %p170 = por %p168, %p169
      %p171 = scmp.ne.s32.totalorder %s162, %s163
      %p172 = scmp.eq.s32.totalorder %s26, 0
      %p173 = por %p171, %p172
      %p174 = scmp.ne.s32.totalorder %s162, %s163
      %p175 = scmp.eq.s32.totalorder %s27, 1
      %p176 = por %p174, %p175
      %p178 = scmp.ne.s32.totalorder %s163, %s177
      %p179 = scmp.eq.s32.totalorder %s27, 0
      %p180 = por %p178, %p179
      %s181 = ssub.s32 %s21, %s28
      %p182 = scmp.eq.s32.totalorder %s181, 0
      %s184 = sadd.s32 %s183, 1
      %s185 = scalar_select %p182, %s183, %s184
      %p188 = pneg %p182
      %p189 = scmp.eq.s32.totalorder %s21, 1
      %p190 = por %p188, %p189
      %p191 = scmp.ne.s32.totalorder %s183, %s186
      %p192 = scmp.eq.s32.totalorder %s21, 0
      %p193 = por %p191, %p192
      %p194 = scmp.ne.s32.totalorder %s183, %s186
      %p195 = scmp.eq.s32.totalorder %s26, 1
      %p196 = por %p194, %p195
      %p197 = scmp.ne.s32.totalorder %s186, %s187
      %p198 = scmp.eq.s32.totalorder %s26, 0
      %p199 = por %p197, %p198
      %p200 = scmp.ne.s32.totalorder %s186, %s187
      %p201 = scmp.eq.s32.totalorder %s27, 1
      %p202 = por %p200, %p201
      %p204 = scmp.ne.s32.totalorder %s187, %s203
      %p205 = scmp.eq.s32.totalorder %s27, 0
      %p206 = por %p204, %p205
      %p207 = scmp.le.s32.totalorder 1, %s21
      %p208 = scmp.lt.s32.totalorder %s21, 3
      %p209 = pnand %p207, %p208
      %p210 = pneg %p209
      // Predicated region
      $region9: #{tpu_custom_call.1} parent=5 // pred_check
        _
      $region10: #{tpu_custom_call.1} parent=5 // pred_check_branch
        %212 = sbr.rel (%p209) target = $region12
      $region11: #{tpu_custom_call.1} parent=5 // pred_region
        %s213 = ssub.s32 %s21, 1
        // Predicated region
        $region13: #{tpu_custom_call.1} parent=11 // pred_check
          %p214 = pneg %p68
        $region14: #{tpu_custom_call.1} parent=11 // pred_check_branch
          %216 = sbr.rel (%p214) target = $region16
        $region15: #{tpu_custom_call.1} parent=11 // pred_region
          %218 = vsyncadd [#allocation6], 0
          %s219 = sshll.u32 %s1, 4
          %s220 = int_to_ptr.hbm [resolvable:$true] %s219
          %s221 = sshll.u32 [#allocation5], 4
          %s222 = int_to_ptr.vmem [resolvable:$true] %s221
          %227 = dma.hbm_to_vmem [thread:$0]  %s220, 2048, %s222, [#allocation6], 128, 128, 8
        $region16: #{tpu_custom_call.1} parent=11 // pred_fallthru
          _
        // Predicated region
        $region17: #{tpu_custom_call.1} parent=11 // pred_check
          %p228 = pneg %p89
        $region18: #{tpu_custom_call.1} parent=11 // pred_check_branch
          %230 = sbr.rel (%p228) target = $region20
        $region19: #{tpu_custom_call.1} parent=11 // pred_region
          _
        $region20: #{tpu_custom_call.1} parent=11 // pred_fallthru
          _
        // Predicated region
        $region21: #{tpu_custom_call.1} parent=11 // pred_check
          %p231 = pneg %p110
        $region22: #{tpu_custom_call.1} parent=11 // pred_check_branch
          %233 = sbr.rel (%p231) target = $region24
        $region23: #{tpu_custom_call.1} parent=11 // pred_region
          %235 = vsyncadd [#allocation6], 0
          %s236 = sshll.u32 %s3, 4
          %s237 = int_to_ptr.hbm [resolvable:$true] %s236
          %s238 = sshll.u32 [#allocation7], 4
          %s239 = int_to_ptr.vmem [resolvable:$true] %s238
          %244 = dma.hbm_to_vmem [thread:$0]  %s237, 2048, %s239, [#allocation6], 128, 128, 8
        $region24: #{tpu_custom_call.1} parent=11 // pred_fallthru
          _
        // Predicated region
        $region25: #{tpu_custom_call.1} parent=11 // pred_check
          %p245 = pneg %p131
        $region26: #{tpu_custom_call.1} parent=11 // pred_check_branch
          %247 = sbr.rel (%p245) target = $region28
        $region27: #{tpu_custom_call.1} parent=11 // pred_region
          _
        $region28: #{tpu_custom_call.1} parent=11 // pred_fallthru
          _
        // Predicated region
        $region29: #{tpu_custom_call.1} parent=11 // pred_check
          %p248 = pneg %p152
        $region30: #{tpu_custom_call.1} parent=11 // pred_check_branch
          %250 = sbr.rel (%p248) target = $region32
        $region31: #{tpu_custom_call.1} parent=11 // pred_region
          %252 = vsyncadd [#allocation9], 0
          %s253 = sshll.u32 %s5, 4
          %s254 = int_to_ptr.hbm [resolvable:$true] %s253
          %s255 = sshll.u32 [#allocation8], 4
          %s256 = int_to_ptr.vmem [resolvable:$true] %s255
          %261 = dma.hbm_to_vmem [thread:$0]  %s254, 2048, %s256, [#allocation9], 128, 128, 8
        $region32: #{tpu_custom_call.1} parent=11 // pred_fallthru
          _
        // Predicated region
        $region33: #{tpu_custom_call.1} parent=11 // pred_check
          %p262 = pneg %p173
        $region34: #{tpu_custom_call.1} parent=11 // pred_check_branch
          %264 = sbr.rel (%p262) target = $region36
        $region35: #{tpu_custom_call.1} parent=11 // pred_region
          _
        $region36: #{tpu_custom_call.1} parent=11 // pred_fallthru
          _
      $region12: #{tpu_custom_call.1} parent=5 // pred_fallthru
        _
      %p265 = scmp.lt.s32.totalorder %s21, 2
      // Predicated region
      $region37: #{tpu_custom_call.1} parent=5 // pred_check
        %p266 = pneg %p265
      $region38: #{tpu_custom_call.1} parent=5 // pred_check_branch
        %268 = sbr.rel (%p266) target = $region40
      $region39: #{tpu_custom_call.1} parent=5 // pred_region
        // Predicated region
        $region41: #{tpu_custom_call.1} parent=39 // pred_check
          %p269 = pneg %p41
        $region42: #{tpu_custom_call.1} parent=39 // pred_check_branch
          %271 = sbr.rel (%p269) target = $region44
        $region43: #{tpu_custom_call.1} parent=39 // pred_region
          %s272 = sand.u32 %s31, 1
          %s273 = scalar_lea.sflag [#allocation3], %s272
          %s274 = sand.u32 %s31, 1
          %s275 = smul.addr %s274, 256
          %s276 = scalar_lea.vmem [#allocation2], %s275
          %s277 = smul.u32 32, %s21
          %279 = vsyncadd %s273, 0
          %s280 = smul.addr %s277, 8
          %s281 = scalar_lea.hbm %s0, %s280
          %s282 = sshll.u32 %s281, 4
          %s283 = int_to_ptr.hbm [resolvable:$true] %s282
          %s284 = sshll.u32 %s276, 4
          %s285 = int_to_ptr.vmem [resolvable:$true] %s284
          %290 = dma.hbm_to_vmem [thread:$0]  %s283, 4096, %s285, %s273, 128, 128, 8
        $region44: #{tpu_custom_call.1} parent=39 // pred_fallthru
          _
      $region40: #{tpu_custom_call.1} parent=5 // pred_fallthru
        _
      %p291 = scmp.le.s32.totalorder 1, %s21
      %p292 = scmp.lt.s32.totalorder %s21, 3
      %p293 = pnand %p291, %p292
      %p294 = pneg %p293
      // Predicated region
      $region45: #{tpu_custom_call.1} parent=5 // pred_check
        _
      $region46: #{tpu_custom_call.1} parent=5 // pred_check_branch
        %296 = sbr.rel (%p293) target = $region48
      $region47: #{tpu_custom_call.1} parent=5 // pred_region
        %s297 = ssub.s32 %s21, 1
        %s298 = sand.u32 %s34, 1
        %s299 = scalar_lea.sflag [#allocation3], %s298
        %s300 = sand.u32 %s34, 1
        %s301 = smul.addr %s300, 256
        %s302 = scalar_lea.vmem [#allocation2], %s301
        // Predicated region
        $region49: #{tpu_custom_call.1} parent=47 // pred_check
          %p303 = pneg %p47
        $region50: #{tpu_custom_call.1} parent=47 // pred_check_branch
          %305 = sbr.rel (%p303) target = $region52
        $region51: #{tpu_custom_call.1} parent=47 // pred_region
          %307 = dma.done %s299, 4096
        $region52: #{tpu_custom_call.1} parent=47 // pred_fallthru
          _
        // Predicated region
        $region53: #{tpu_custom_call.1} parent=47 // pred_check
          %p308 = pneg %p68
        $region54: #{tpu_custom_call.1} parent=47 // pred_check_branch
          %310 = sbr.rel (%p308) target = $region56
        $region55: #{tpu_custom_call.1} parent=47 // pred_region
          %312 = dma.done [#allocation6], 2048
        $region56: #{tpu_custom_call.1} parent=47 // pred_fallthru
          _
        // Predicated region
        $region57: #{tpu_custom_call.1} parent=47 // pred_check
          %p313 = pneg %p110
        $region58: #{tpu_custom_call.1} parent=47 // pred_check_branch
          %315 = sbr.rel (%p313) target = $region60
        $region59: #{tpu_custom_call.1} parent=47 // pred_region
          %317 = dma.done [#allocation6], 2048
        $region60: #{tpu_custom_call.1} parent=47 // pred_fallthru
          _
        // Predicated region
        $region61: #{tpu_custom_call.1} parent=47 // pred_check
          %p318 = pneg %p152
        $region62: #{tpu_custom_call.1} parent=47 // pred_check_branch
          %320 = sbr.rel (%p318) target = $region64
        $region63: #{tpu_custom_call.1} parent=47 // pred_region
          %322 = dma.done [#allocation9], 2048
        $region64: #{tpu_custom_call.1} parent=47 // pred_fallthru
          _
        %s323 = sand.u32 %s34, 1
        %s324 = scalar_lea.sflag [#allocation3], %s323
        %s325 = sand.u32 %s34, 1
        %s326 = smul.addr %s325, 256
        %s327 = scalar_lea.vmem [#allocation2], %s326
        %p328 = pneg %p47
        %p329 = pneg %p44
        %p330 = pneg %p68
        %p331 = pneg %p65
        %p332 = pneg %p89
        %p333 = pneg %p86
        %p334 = pneg %p110
        %p335 = pneg %p107
        %p336 = pneg %p131
        %p337 = pneg %p128
        %p338 = pneg %p152
        %p339 = pneg %p149
        %p340 = pneg %p173
        %p341 = pneg %p170
        %p342 = pneg %p199
        %p343 = pneg %p196
        %s344 = sand.u32 %s186, 1
        %s345 = scalar_lea.sflag [#allocation4], %s344
        %s346 = sand.u32 %s186, 1
        %s347 = smul.addr %s346, 256
        %s348 = scalar_lea.vmem [#allocation10], %s347
        %s349 = smul.u32 32, %s26
        %s350 = smul.u32 32, %s26
        %v351 = vld [vmem:[%s302] sm:$0xff]
        %v352 = vld [vmem:[%s302 + $0x8] sm:$0xff]
        %v353 = vld [vmem:[%s302 + $0x10] sm:$0xff]
        %v354 = vld [vmem:[%s302 + $0x18] sm:$0xff]
        %v355 = vld [vmem:[%s302 + $0x20] sm:$0xff]
        %v356 = vld [vmem:[%s302 + $0x28] sm:$0xff]
        %v357 = vld [vmem:[%s302 + $0x30] sm:$0xff]
        %v358 = vld [vmem:[%s302 + $0x38] sm:$0xff]
        %v359 = vld [vmem:[%s302 + $0x40] sm:$0xff]
        %v360 = vld [vmem:[%s302 + $0x48] sm:$0xff]
        %v361 = vld [vmem:[%s302 + $0x50] sm:$0xff]
        %v362 = vld [vmem:[%s302 + $0x58] sm:$0xff]
        %v363 = vld [vmem:[%s302 + $0x60] sm:$0xff]
        %v364 = vld [vmem:[%s302 + $0x68] sm:$0xff]
        %v365 = vld [vmem:[%s302 + $0x70] sm:$0xff]
        %v366 = vld [vmem:[%s302 + $0x78] sm:$0xff]
        %v367 = vld [vmem:[%s302 + $0x80] sm:$0xff]
        %v368 = vld [vmem:[%s302 + $0x88] sm:$0xff]
        %v369 = vld [vmem:[%s302 + $0x90] sm:$0xff]
        %v370 = vld [vmem:[%s302 + $0x98] sm:$0xff]
        %v371 = vld [vmem:[%s302 + $0xa0] sm:$0xff]
        %v372 = vld [vmem:[%s302 + $0xa8] sm:$0xff]
        %v373 = vld [vmem:[%s302 + $0xb0] sm:$0xff]
        %v374 = vld [vmem:[%s302 + $0xb8] sm:$0xff]
        %v375 = vld [vmem:[%s302 + $0xc0] sm:$0xff]
        %v376 = vld [vmem:[%s302 + $0xc8] sm:$0xff]
        %v377 = vld [vmem:[%s302 + $0xd0] sm:$0xff]
        %v378 = vld [vmem:[%s302 + $0xd8] sm:$0xff]
        %v379 = vld [vmem:[%s302 + $0xe0] sm:$0xff]
        %v380 = vld [vmem:[%s302 + $0xe8] sm:$0xff]
        %v381 = vld [vmem:[%s302 + $0xf0] sm:$0xff]
        %v382 = vld [vmem:[%s302 + $0xf8] sm:$0xff]
        %v383 = vld [vmem:[#allocation5] sm:$0xff]
        %v384 = vld [vmem:[#allocation5 + $0x8] sm:$0xff]
        %v385 = vld [vmem:[#allocation5 + $0x10] sm:$0xff]
        %v386 = vld [vmem:[#allocation5 + $0x18] sm:$0xff]
        %v387 = vld [vmem:[#allocation5 + $0x20] sm:$0xff]
        %v388 = vld [vmem:[#allocation5 + $0x28] sm:$0xff]
        %v389 = vld [vmem:[#allocation5 + $0x30] sm:$0xff]
        %v390 = vld [vmem:[#allocation5 + $0x38] sm:$0xff]
        %v391 = vld [vmem:[#allocation5 + $0x40] sm:$0xff]
        %v392 = vld [vmem:[#allocation5 + $0x48] sm:$0xff]
        %v393 = vld [vmem:[#allocation5 + $0x50] sm:$0xff]
        %v394 = vld [vmem:[#allocation5 + $0x58] sm:$0xff]
        %v395 = vld [vmem:[#allocation5 + $0x60] sm:$0xff]
        %v396 = vld [vmem:[#allocation5 + $0x68] sm:$0xff]
        %v397 = vld [vmem:[#allocation5 + $0x70] sm:$0xff]
        %v398 = vld [vmem:[#allocation5 + $0x78] sm:$0xff]
        %v399 = vld [vmem:[%s2] sm:$0x1]
        %v401 = vperm.slane %v399, 0
        %403 = vmatpush.msra.mxu0 %v398
        %404 = vmatpush.msra.mxu0 %v397
        %405 = vmatpush.msra.mxu0 %v396
        %406 = vmatpush.msra.mxu0 %v395
        %407 = vmatpush.msra.mxu0 %v394
        %408 = vmatpush.msra.mxu0 %v393
        %409 = vmatpush.msra.mxu0 %v392
        %410 = vmatpush.msra.mxu0 %v391
        %411 = vmatpush.msra.mxu0 %v390
        %412 = vmatpush.msra.mxu0 %v389
        %413 = vmatpush.msra.mxu0 %v388
        %414 = vmatpush.msra.mxu0 %v387
        %415 = vmatpush.msra.mxu0 %v386
        %416 = vmatpush.msra.mxu0 %v385
        %417 = vmatpush.msra.mxu0 %v384
        %418 = vmatpush.msra.mxu0 %v383
        %419 = vmatmul.f32.gmra.mxu0 %v351
        %v420 = vpop.f32.mrf.mxu0
        %v421 = vadd.f32 %v401, %v420
        %422 = vmatmul.f32.gmra.mxu0 %v352
        %v423 = vpop.f32.mrf.mxu0
        %v424 = vadd.f32 %v401, %v423
        %425 = vmatmul.f32.gmra.mxu0 %v353
        %v426 = vpop.f32.mrf.mxu0
        %v427 = vadd.f32 %v401, %v426
        %428 = vmatmul.f32.gmra.mxu0 %v354
        %v429 = vpop.f32.mrf.mxu0
        %v430 = vadd.f32 %v401, %v429
        %431 = vmatmul.f32.gmra.mxu0 %v355
        %v432 = vpop.f32.mrf.mxu0
        %v433 = vadd.f32 %v401, %v432
        %434 = vmatmul.f32.gmra.mxu0 %v356
        %v435 = vpop.f32.mrf.mxu0
        %v436 = vadd.f32 %v401, %v435
        %437 = vmatmul.f32.gmra.mxu0 %v357
        %v438 = vpop.f32.mrf.mxu0
        %v439 = vadd.f32 %v401, %v438
        %440 = vmatmul.f32.gmra.mxu0 %v358
        %v441 = vpop.f32.mrf.mxu0
        %v442 = vadd.f32 %v401, %v441
        %443 = vmatmul.f32.gmra.mxu0 %v359
        %v444 = vpop.f32.mrf.mxu0
        %v445 = vadd.f32 %v401, %v444
        %446 = vmatmul.f32.gmra.mxu0 %v360
        %v447 = vpop.f32.mrf.mxu0
        %v448 = vadd.f32 %v401, %v447
        %449 = vmatmul.f32.gmra.mxu0 %v361
        %v450 = vpop.f32.mrf.mxu0
        %v451 = vadd.f32 %v401, %v450
        %452 = vmatmul.f32.gmra.mxu0 %v362
        %v453 = vpop.f32.mrf.mxu0
        %v454 = vadd.f32 %v401, %v453
        %455 = vmatmul.f32.gmra.mxu0 %v363
        %v456 = vpop.f32.mrf.mxu0
        %v457 = vadd.f32 %v401, %v456
        %458 = vmatmul.f32.gmra.mxu0 %v364
        %v459 = vpop.f32.mrf.mxu0
        %v460 = vadd.f32 %v401, %v459
        %461 = vmatmul.f32.gmra.mxu0 %v365
        %v462 = vpop.f32.mrf.mxu0
        %v463 = vadd.f32 %v401, %v462
        %464 = vmatmul.f32.gmra.mxu0 %v366
        %v465 = vpop.f32.mrf.mxu0
        %v466 = vadd.f32 %v401, %v465
        %467 = vmatmul.f32.gmra.mxu0 %v367
        %v468 = vpop.f32.mrf.mxu0
        %v469 = vadd.f32 %v401, %v468
        %470 = vmatmul.f32.gmra.mxu0 %v368
        %v471 = vpop.f32.mrf.mxu0
        %v472 = vadd.f32 %v401, %v471
        %473 = vmatmul.f32.gmra.mxu0 %v369
        %v474 = vpop.f32.mrf.mxu0
        %v475 = vadd.f32 %v401, %v474
        %476 = vmatmul.f32.gmra.mxu0 %v370
        %v477 = vpop.f32.mrf.mxu0
        %v478 = vadd.f32 %v401, %v477
        %479 = vmatmul.f32.gmra.mxu0 %v371
        %v480 = vpop.f32.mrf.mxu0
        %v481 = vadd.f32 %v401, %v480
        %482 = vmatmul.f32.gmra.mxu0 %v372
        %v483 = vpop.f32.mrf.mxu0
        %v484 = vadd.f32 %v401, %v483
        %485 = vmatmul.f32.gmra.mxu0 %v373
        %v486 = vpop.f32.mrf.mxu0
        %v487 = vadd.f32 %v401, %v486
        %488 = vmatmul.f32.gmra.mxu0 %v374
        %v489 = vpop.f32.mrf.mxu0
        %v490 = vadd.f32 %v401, %v489
        %491 = vmatmul.f32.gmra.mxu0 %v375
        %v492 = vpop.f32.mrf.mxu0
        %v493 = vadd.f32 %v401, %v492
        %494 = vmatmul.f32.gmra.mxu0 %v376
        %v495 = vpop.f32.mrf.mxu0
        %v496 = vadd.f32 %v401, %v495
        %497 = vmatmul.f32.gmra.mxu0 %v377
        %v498 = vpop.f32.mrf.mxu0
        %v499 = vadd.f32 %v401, %v498
        %500 = vmatmul.f32.gmra.mxu0 %v378
        %v501 = vpop.f32.mrf.mxu0
        %v502 = vadd.f32 %v401, %v501
        %503 = vmatmul.f32.gmra.mxu0 %v379
        %v504 = vpop.f32.mrf.mxu0
        %v505 = vadd.f32 %v401, %v504
        %506 = vmatmul.f32.gmra.mxu0 %v380
        %v507 = vpop.f32.mrf.mxu0
        %v508 = vadd.f32 %v401, %v507
        %509 = vmatmul.f32.gmra.mxu0 %v381
        %v510 = vpop.f32.mrf.mxu0
        %v511 = vadd.f32 %v401, %v510
        %512 = vmatmul.f32.gmra.mxu0 %v382
        %v513 = vpop.f32.mrf.mxu0
        %v514 = vadd.f32 %v401, %v513
        %515 = vdwg.mxu0
        %v516 = vmax.f32 %v421, 0.0
        %v517 = vmax.f32 %v424, 0.0
        %v518 = vmax.f32 %v427, 0.0
        %v519 = vmax.f32 %v430, 0.0
        %v520 = vmax.f32 %v433, 0.0
        %v521 = vmax.f32 %v436, 0.0
        %v522 = vmax.f32 %v439, 0.0
        %v523 = vmax.f32 %v442, 0.0
        %v524 = vmax.f32 %v445, 0.0
        %v525 = vmax.f32 %v448, 0.0
        %v526 = vmax.f32 %v451, 0.0
        %v527 = vmax.f32 %v454, 0.0
        %v528 = vmax.f32 %v457, 0.0
        %v529 = vmax.f32 %v460, 0.0
        %v530 = vmax.f32 %v463, 0.0
        %v531 = vmax.f32 %v466, 0.0
        %v532 = vmax.f32 %v469, 0.0
        %v533 = vmax.f32 %v472, 0.0
        %v534 = vmax.f32 %v475, 0.0
        %v535 = vmax.f32 %v478, 0.0
        %v536 = vmax.f32 %v481, 0.0
        %v537 = vmax.f32 %v484, 0.0
        %v538 = vmax.f32 %v487, 0.0
        %v539 = vmax.f32 %v490, 0.0
        %v540 = vmax.f32 %v493, 0.0
        %v541 = vmax.f32 %v496, 0.0
        %v542 = vmax.f32 %v499, 0.0
        %v543 = vmax.f32 %v502, 0.0
        %v544 = vmax.f32 %v505, 0.0
        %v545 = vmax.f32 %v508, 0.0
        %v546 = vmax.f32 %v511, 0.0
        %v547 = vmax.f32 %v514, 0.0
        %v548 = vld [vmem:[#allocation7] sm:$0xff]
        %v549 = vld [vmem:[#allocation7 + $0x8] sm:$0xff]
        %v550 = vld [vmem:[#allocation7 + $0x10] sm:$0xff]
        %v551 = vld [vmem:[#allocation7 + $0x18] sm:$0xff]
        %v552 = vld [vmem:[#allocation7 + $0x20] sm:$0xff]
        %v553 = vld [vmem:[#allocation7 + $0x28] sm:$0xff]
        %v554 = vld [vmem:[#allocation7 + $0x30] sm:$0xff]
        %v555 = vld [vmem:[#allocation7 + $0x38] sm:$0xff]
        %v556 = vld [vmem:[#allocation7 + $0x40] sm:$0xff]
        %v557 = vld [vmem:[#allocation7 + $0x48] sm:$0xff]
        %v558 = vld [vmem:[#allocation7 + $0x50] sm:$0xff]
        %v559 = vld [vmem:[#allocation7 + $0x58] sm:$0xff]
        %v560 = vld [vmem:[#allocation7 + $0x60] sm:$0xff]
        %v561 = vld [vmem:[#allocation7 + $0x68] sm:$0xff]
        %v562 = vld [vmem:[#allocation7 + $0x70] sm:$0xff]
        %v563 = vld [vmem:[#allocation7 + $0x78] sm:$0xff]
        %v564 = vld [vmem:[%s4] sm:$0x1]
        %v566 = vperm.slane %v564, 0
        %568 = vmatpush.msra.mxu0 %v563
        %569 = vmatpush.msra.mxu0 %v562
        %570 = vmatpush.msra.mxu0 %v561
        %571 = vmatpush.msra.mxu0 %v560
        %572 = vmatpush.msra.mxu0 %v559
        %573 = vmatpush.msra.mxu0 %v558
        %574 = vmatpush.msra.mxu0 %v557
        %575 = vmatpush.msra.mxu0 %v556
        %576 = vmatpush.msra.mxu0 %v555
        %577 = vmatpush.msra.mxu0 %v554
        %578 = vmatpush.msra.mxu0 %v553
        %579 = vmatpush.msra.mxu0 %v552
        %580 = vmatpush.msra.mxu0 %v551
        %581 = vmatpush.msra.mxu0 %v550
        %582 = vmatpush.msra.mxu0 %v549
        %583 = vmatpush.msra.mxu0 %v548
        %584 = vmatmul.f32.gmra.mxu0 %v516
        %v585 = vpop.f32.mrf.mxu0
        %v586 = vadd.f32 %v566, %v585
        %587 = vmatmul.f32.gmra.mxu0 %v517
        %v588 = vpop.f32.mrf.mxu0
        %v589 = vadd.f32 %v566, %v588
        %590 = vmatmul.f32.gmra.mxu0 %v518
        %v591 = vpop.f32.mrf.mxu0
        %v592 = vadd.f32 %v566, %v591
        %593 = vmatmul.f32.gmra.mxu0 %v519
        %v594 = vpop.f32.mrf.mxu0
        %v595 = vadd.f32 %v566, %v594
        %596 = vmatmul.f32.gmra.mxu0 %v520
        %v597 = vpop.f32.mrf.mxu0
        %v598 = vadd.f32 %v566, %v597
        %599 = vmatmul.f32.gmra.mxu0 %v521
        %v600 = vpop.f32.mrf.mxu0
        %v601 = vadd.f32 %v566, %v600
        %602 = vmatmul.f32.gmra.mxu0 %v522
        %v603 = vpop.f32.mrf.mxu0
        %v604 = vadd.f32 %v566, %v603
        %605 = vmatmul.f32.gmra.mxu0 %v523
        %v606 = vpop.f32.mrf.mxu0
        %v607 = vadd.f32 %v566, %v606
        %608 = vmatmul.f32.gmra.mxu0 %v524
        %v609 = vpop.f32.mrf.mxu0
        %v610 = vadd.f32 %v566, %v609
        %611 = vmatmul.f32.gmra.mxu0 %v525
        %v612 = vpop.f32.mrf.mxu0
        %v613 = vadd.f32 %v566, %v612
        %614 = vmatmul.f32.gmra.mxu0 %v526
        %v615 = vpop.f32.mrf.mxu0
        %v616 = vadd.f32 %v566, %v615
        %617 = vmatmul.f32.gmra.mxu0 %v527
        %v618 = vpop.f32.mrf.mxu0
        %v619 = vadd.f32 %v566, %v618
        %620 = vmatmul.f32.gmra.mxu0 %v528
        %v621 = vpop.f32.mrf.mxu0
        %v622 = vadd.f32 %v566, %v621
        %623 = vmatmul.f32.gmra.mxu0 %v529
        %v624 = vpop.f32.mrf.mxu0
        %v625 = vadd.f32 %v566, %v624
        %626 = vmatmul.f32.gmra.mxu0 %v530
        %v627 = vpop.f32.mrf.mxu0
        %v628 = vadd.f32 %v566, %v627
        %629 = vmatmul.f32.gmra.mxu0 %v531
        %v630 = vpop.f32.mrf.mxu0
        %v631 = vadd.f32 %v566, %v630
        %632 = vmatmul.f32.gmra.mxu0 %v532
        %v633 = vpop.f32.mrf.mxu0
        %v634 = vadd.f32 %v566, %v633
        %635 = vmatmul.f32.gmra.mxu0 %v533
        %v636 = vpop.f32.mrf.mxu0
        %v637 = vadd.f32 %v566, %v636
        %638 = vmatmul.f32.gmra.mxu0 %v534
        %v639 = vpop.f32.mrf.mxu0
        %v640 = vadd.f32 %v566, %v639
        %641 = vmatmul.f32.gmra.mxu0 %v535
        %v642 = vpop.f32.mrf.mxu0
        %v643 = vadd.f32 %v566, %v642
        %644 = vmatmul.f32.gmra.mxu0 %v536
        %v645 = vpop.f32.mrf.mxu0
        %v646 = vadd.f32 %v566, %v645
        %647 = vmatmul.f32.gmra.mxu0 %v537
        %v648 = vpop.f32.mrf.mxu0
        %v649 = vadd.f32 %v566, %v648
        %650 = vmatmul.f32.gmra.mxu0 %v538
        %v651 = vpop.f32.mrf.mxu0
        %v652 = vadd.f32 %v566, %v651
        %653 = vmatmul.f32.gmra.mxu0 %v539
        %v654 = vpop.f32.mrf.mxu0
        %v655 = vadd.f32 %v566, %v654
        %656 = vmatmul.f32.gmra.mxu0 %v540
        %v657 = vpop.f32.mrf.mxu0
        %v658 = vadd.f32 %v566, %v657
        %659 = vmatmul.f32.gmra.mxu0 %v541
        %v660 = vpop.f32.mrf.mxu0
        %v661 = vadd.f32 %v566, %v660
        %662 = vmatmul.f32.gmra.mxu0 %v542
        %v663 = vpop.f32.mrf.mxu0
        %v664 = vadd.f32 %v566, %v663
        %665 = vmatmul.f32.gmra.mxu0 %v543
        %v666 = vpop.f32.mrf.mxu0
        %v667 = vadd.f32 %v566, %v666
        %668 = vmatmul.f32.gmra.mxu0 %v544
        %v669 = vpop.f32.mrf.mxu0
        %v670 = vadd.f32 %v566, %v669
        %671 = vmatmul.f32.gmra.mxu0 %v545
        %v672 = vpop.f32.mrf.mxu0
        %v673 = vadd.f32 %v566, %v672
        %674 = vmatmul.f32.gmra.mxu0 %v546
        %v675 = vpop.f32.mrf.mxu0
        %v676 = vadd.f32 %v566, %v675
        %677 = vmatmul.f32.gmra.mxu0 %v547
        %v678 = vpop.f32.mrf.mxu0
        %v679 = vadd.f32 %v566, %v678
        %680 = vdwg.mxu0
        %v681 = vmax.f32 %v586, 0.0
        %v682 = vmax.f32 %v589, 0.0
        %v683 = vmax.f32 %v592, 0.0
        %v684 = vmax.f32 %v595, 0.0
        %v685 = vmax.f32 %v598, 0.0
        %v686 = vmax.f32 %v601, 0.0
        %v687 = vmax.f32 %v604, 0.0
        %v688 = vmax.f32 %v607, 0.0
        %v689 = vmax.f32 %v610, 0.0
        %v690 = vmax.f32 %v613, 0.0
        %v691 = vmax.f32 %v616, 0.0
        %v692 = vmax.f32 %v619, 0.0
        %v693 = vmax.f32 %v622, 0.0
        %v694 = vmax.f32 %v625, 0.0
        %v695 = vmax.f32 %v628, 0.0
        %v696 = vmax.f32 %v631, 0.0
        %v697 = vmax.f32 %v634, 0.0
        %v698 = vmax.f32 %v637, 0.0
        %v699 = vmax.f32 %v640, 0.0
        %v700 = vmax.f32 %v643, 0.0
        %v701 = vmax.f32 %v646, 0.0
        %v702 = vmax.f32 %v649, 0.0
        %v703 = vmax.f32 %v652, 0.0
        %v704 = vmax.f32 %v655, 0.0
        %v705 = vmax.f32 %v658, 0.0
        %v706 = vmax.f32 %v661, 0.0
        %v707 = vmax.f32 %v664, 0.0
        %v708 = vmax.f32 %v667, 0.0
        %v709 = vmax.f32 %v670, 0.0
        %v710 = vmax.f32 %v673, 0.0
        %v711 = vmax.f32 %v676, 0.0
        %v712 = vmax.f32 %v679, 0.0
        %v713 = vld [vmem:[#allocation8] sm:$0xff]
        %v714 = vld [vmem:[#allocation8 + $0x8] sm:$0xff]
        %v715 = vld [vmem:[#allocation8 + $0x10] sm:$0xff]
        %v716 = vld [vmem:[#allocation8 + $0x18] sm:$0xff]
        %v717 = vld [vmem:[#allocation8 + $0x20] sm:$0xff]
        %v718 = vld [vmem:[#allocation8 + $0x28] sm:$0xff]
        %v719 = vld [vmem:[#allocation8 + $0x30] sm:$0xff]
        %v720 = vld [vmem:[#allocation8 + $0x38] sm:$0xff]
        %v721 = vld [vmem:[#allocation8 + $0x40] sm:$0xff]
        %v722 = vld [vmem:[#allocation8 + $0x48] sm:$0xff]
        %v723 = vld [vmem:[#allocation8 + $0x50] sm:$0xff]
        %v724 = vld [vmem:[#allocation8 + $0x58] sm:$0xff]
        %v725 = vld [vmem:[#allocation8 + $0x60] sm:$0xff]
        %v726 = vld [vmem:[#allocation8 + $0x68] sm:$0xff]
        %v727 = vld [vmem:[#allocation8 + $0x70] sm:$0xff]
        %v728 = vld [vmem:[#allocation8 + $0x78] sm:$0xff]
        %v729 = vld [vmem:[%s6] sm:$0x1]
        %v731 = vperm.slane %v729, 0
        %733 = vmatpush.msra.mxu0 %v728
        %734 = vmatpush.msra.mxu0 %v727
        %735 = vmatpush.msra.mxu0 %v726
        %736 = vmatpush.msra.mxu0 %v725
        %737 = vmatpush.msra.mxu0 %v724
        %738 = vmatpush.msra.mxu0 %v723
        %739 = vmatpush.msra.mxu0 %v722
        %740 = vmatpush.msra.mxu0 %v721
        %741 = vmatpush.msra.mxu0 %v720
        %742 = vmatpush.msra.mxu0 %v719
        %743 = vmatpush.msra.mxu0 %v718
        %744 = vmatpush.msra.mxu0 %v717
        %745 = vmatpush.msra.mxu0 %v716
        %746 = vmatpush.msra.mxu0 %v715
        %747 = vmatpush.msra.mxu0 %v714
        %748 = vmatpush.msra.mxu0 %v713
        %749 = vmatmul.f32.gmra.mxu0 %v681
        %v750 = vpop.f32.mrf.mxu0
        %v751 = vadd.f32 %v731, %v750
        %752 = vmatmul.f32.gmra.mxu0 %v682
        %v753 = vpop.f32.mrf.mxu0
        %v754 = vadd.f32 %v731, %v753
        %755 = vmatmul.f32.gmra.mxu0 %v683
        %v756 = vpop.f32.mrf.mxu0
        %v757 = vadd.f32 %v731, %v756
        %758 = vmatmul.f32.gmra.mxu0 %v684
        %v759 = vpop.f32.mrf.mxu0
        %v760 = vadd.f32 %v731, %v759
        %761 = vmatmul.f32.gmra.mxu0 %v685
        %v762 = vpop.f32.mrf.mxu0
        %v763 = vadd.f32 %v731, %v762
        %764 = vmatmul.f32.gmra.mxu0 %v686
        %v765 = vpop.f32.mrf.mxu0
        %v766 = vadd.f32 %v731, %v765
        %767 = vmatmul.f32.gmra.mxu0 %v687
        %v768 = vpop.f32.mrf.mxu0
        %v769 = vadd.f32 %v731, %v768
        %770 = vmatmul.f32.gmra.mxu0 %v688
        %v771 = vpop.f32.mrf.mxu0
        %v772 = vadd.f32 %v731, %v771
        %773 = vmatmul.f32.gmra.mxu0 %v689
        %v774 = vpop.f32.mrf.mxu0
        %v775 = vadd.f32 %v731, %v774
        %776 = vmatmul.f32.gmra.mxu0 %v690
        %v777 = vpop.f32.mrf.mxu0
        %v778 = vadd.f32 %v731, %v777
        %779 = vmatmul.f32.gmra.mxu0 %v691
        %v780 = vpop.f32.mrf.mxu0
        %v781 = vadd.f32 %v731, %v780
        %782 = vmatmul.f32.gmra.mxu0 %v692
        %v783 = vpop.f32.mrf.mxu0
        %v784 = vadd.f32 %v731, %v783
        %785 = vmatmul.f32.gmra.mxu0 %v693
        %v786 = vpop.f32.mrf.mxu0
        %v787 = vadd.f32 %v731, %v786
        %788 = vmatmul.f32.gmra.mxu0 %v694
        %v789 = vpop.f32.mrf.mxu0
        %v790 = vadd.f32 %v731, %v789
        %791 = vmatmul.f32.gmra.mxu0 %v695
        %v792 = vpop.f32.mrf.mxu0
        %v793 = vadd.f32 %v731, %v792
        %794 = vmatmul.f32.gmra.mxu0 %v696
        %v795 = vpop.f32.mrf.mxu0
        %v796 = vadd.f32 %v731, %v795
        %797 = vmatmul.f32.gmra.mxu0 %v697
        %v798 = vpop.f32.mrf.mxu0
        %v799 = vadd.f32 %v731, %v798
        %800 = vmatmul.f32.gmra.mxu0 %v698
        %v801 = vpop.f32.mrf.mxu0
        %v802 = vadd.f32 %v731, %v801
        %803 = vmatmul.f32.gmra.mxu0 %v699
        %v804 = vpop.f32.mrf.mxu0
        %v805 = vadd.f32 %v731, %v804
        %806 = vmatmul.f32.gmra.mxu0 %v700
        %v807 = vpop.f32.mrf.mxu0
        %v808 = vadd.f32 %v731, %v807
        %809 = vmatmul.f32.gmra.mxu0 %v701
        %v810 = vpop.f32.mrf.mxu0
        %v811 = vadd.f32 %v731, %v810
        %812 = vmatmul.f32.gmra.mxu0 %v702
        %v813 = vpop.f32.mrf.mxu0
        %v814 = vadd.f32 %v731, %v813
        %815 = vmatmul.f32.gmra.mxu0 %v703
        %v816 = vpop.f32.mrf.mxu0
        %v817 = vadd.f32 %v731, %v816
        %818 = vmatmul.f32.gmra.mxu0 %v704
        %v819 = vpop.f32.mrf.mxu0
        %v820 = vadd.f32 %v731, %v819
        %821 = vmatmul.f32.gmra.mxu0 %v705
        %v822 = vpop.f32.mrf.mxu0
        %v823 = vadd.f32 %v731, %v822
        %824 = vmatmul.f32.gmra.mxu0 %v706
        %v825 = vpop.f32.mrf.mxu0
        %v826 = vadd.f32 %v731, %v825
        %827 = vmatmul.f32.gmra.mxu0 %v707
        %v828 = vpop.f32.mrf.mxu0
        %v829 = vadd.f32 %v731, %v828
        %830 = vmatmul.f32.gmra.mxu0 %v708
        %v831 = vpop.f32.mrf.mxu0
        %v832 = vadd.f32 %v731, %v831
        %833 = vmatmul.f32.gmra.mxu0 %v709
        %v834 = vpop.f32.mrf.mxu0
        %v835 = vadd.f32 %v731, %v834
        %836 = vmatmul.f32.gmra.mxu0 %v710
        %v837 = vpop.f32.mrf.mxu0
        %v838 = vadd.f32 %v731, %v837
        %839 = vmatmul.f32.gmra.mxu0 %v711
        %v840 = vpop.f32.mrf.mxu0
        %v841 = vadd.f32 %v731, %v840
        %842 = vmatmul.f32.gmra.mxu0 %v712
        %v843 = vpop.f32.mrf.mxu0
        %v844 = vadd.f32 %v731, %v843
        %845 = vdwg.mxu0
        %846 = vst [vmem:[%s348] sm:$0xff] %v751
        %847 = vst [vmem:[%s348 + $0x8] sm:$0xff] %v754
        %848 = vst [vmem:[%s348 + $0x10] sm:$0xff] %v757
        %849 = vst [vmem:[%s348 + $0x18] sm:$0xff] %v760
        %850 = vst [vmem:[%s348 + $0x20] sm:$0xff] %v763
        %851 = vst [vmem:[%s348 + $0x28] sm:$0xff] %v766
        %852 = vst [vmem:[%s348 + $0x30] sm:$0xff] %v769
        %853 = vst [vmem:[%s348 + $0x38] sm:$0xff] %v772
        %854 = vst [vmem:[%s348 + $0x40] sm:$0xff] %v775
        %855 = vst [vmem:[%s348 + $0x48] sm:$0xff] %v778
        %856 = vst [vmem:[%s348 + $0x50] sm:$0xff] %v781
        %857 = vst [vmem:[%s348 + $0x58] sm:$0xff] %v784
        %858 = vst [vmem:[%s348 + $0x60] sm:$0xff] %v787
        %859 = vst [vmem:[%s348 + $0x68] sm:$0xff] %v790
        %860 = vst [vmem:[%s348 + $0x70] sm:$0xff] %v793
        %861 = vst [vmem:[%s348 + $0x78] sm:$0xff] %v796
        %862 = vst [vmem:[%s348 + $0x80] sm:$0xff] %v799
        %863 = vst [vmem:[%s348 + $0x88] sm:$0xff] %v802
        %864 = vst [vmem:[%s348 + $0x90] sm:$0xff] %v805
        %865 = vst [vmem:[%s348 + $0x98] sm:$0xff] %v808
        %866 = vst [vmem:[%s348 + $0xa0] sm:$0xff] %v811
        %867 = vst [vmem:[%s348 + $0xa8] sm:$0xff] %v814
        %868 = vst [vmem:[%s348 + $0xb0] sm:$0xff] %v817
        %869 = vst [vmem:[%s348 + $0xb8] sm:$0xff] %v820
        %870 = vst [vmem:[%s348 + $0xc0] sm:$0xff] %v823
        %871 = vst [vmem:[%s348 + $0xc8] sm:$0xff] %v826
        %872 = vst [vmem:[%s348 + $0xd0] sm:$0xff] %v829
        %873 = vst [vmem:[%s348 + $0xd8] sm:$0xff] %v832
        %874 = vst [vmem:[%s348 + $0xe0] sm:$0xff] %v835
        %875 = vst [vmem:[%s348 + $0xe8] sm:$0xff] %v838
        %876 = vst [vmem:[%s348 + $0xf0] sm:$0xff] %v841
        %877 = vst [vmem:[%s348 + $0xf8] sm:$0xff] %v844
        %s878 = sand.u32 %s186, 1
        %s879 = scalar_lea.sflag [#allocation4], %s878
        %s880 = sand.u32 %s186, 1
        %s881 = smul.addr %s880, 256
        %s882 = scalar_lea.vmem [#allocation10], %s881
        // Predicated region
        $region65: #{tpu_custom_call.1} parent=47 // pred_check
          %p883 = pneg %p196
        $region66: #{tpu_custom_call.1} parent=47 // pred_check_branch
          %885 = sbr.rel (%p883) target = $region68
        $region67: #{tpu_custom_call.1} parent=47 // pred_region
          %s886 = smul.u32 32, %s26
          %888 = vsyncadd %s879, 0
          %s889 = smul.addr %s886, 8
          %s890 = scalar_lea.hbm %s7, %s889
          %s891 = sshll.u32 %s882, 4
          %s892 = int_to_ptr.vmem [resolvable:$true] %s891
          %s893 = sshll.u32 %s890, 4
          %s894 = int_to_ptr.hbm [resolvable:$true] %s893
          %899 = dma.vmem_to_hbm [thread:$0]  %s892, 4096, %s894, %s879, 128, 128, 8
        $region68: #{tpu_custom_call.1} parent=47 // pred_fallthru
          _
      $region48: #{tpu_custom_call.1} parent=5 // pred_fallthru
        _
      %p900 = scmp.le.s32.totalorder 2, %s21
      // Predicated region
      $region69: #{tpu_custom_call.1} parent=5 // pred_check
        %p901 = pneg %p900
      $region70: #{tpu_custom_call.1} parent=5 // pred_check_branch
        %903 = sbr.rel (%p901) target = $region72
      $region71: #{tpu_custom_call.1} parent=5 // pred_region
        %s904 = ssub.s32 %s21, 2
        // Predicated region
        $region73: #{tpu_custom_call.1} parent=71 // pred_check
          %p905 = pneg %p202
        $region74: #{tpu_custom_call.1} parent=71 // pred_check_branch
          %907 = sbr.rel (%p905) target = $region76
        $region75: #{tpu_custom_call.1} parent=71 // pred_region
          %s908 = sand.u32 %s187, 1
          %s909 = scalar_lea.sflag [#allocation4], %s908
          %s910 = sand.u32 %s187, 1
          %s911 = smul.addr %s910, 256
          %s912 = scalar_lea.vmem [#allocation10], %s911
          %914 = dma.done %s909, 4096
        $region76: #{tpu_custom_call.1} parent=71 // pred_fallthru
          _
      $region72: #{tpu_custom_call.1} parent=5 // pred_fallthru
        _
    $region6: #{tpu_custom_call.1} parent=1 // loop_footer
      %s25 = sadd.s32 1, %s21
    $region7: #{tpu_custom_call.1} parent=1 // loop_footer_branch
      %20 = sbr.rel target = $region3
    $region8: #{tpu_custom_call.1} parent=1 // loop_exit
      _
    %915 = vsyncpa [#allocation3], 1
    %s916 = scalar_lea.sflag [#allocation3], 1
    %917 = vsyncpa %s916, 1
    %918 = vsyncpa [#allocation6], 1
    %919 = vsyncpa [#allocation9], 1
    %920 = vsyncpa [#allocation4], 1
    %s921 = scalar_lea.sflag [#allocation4], 1
    %922 = vsyncpa %s921, 1

</llo_original>
